<compile_context>
chip_gen: v5e
topology: v5e:2x2
jax: 0.10.0
libtpu: 0.0.40
codegen_flags: <defaults>
</compile_context>

<pallas_src>
import numpy as np
import jax
import jax.numpy as jnp
from jax.experimental import pallas as pl
from jax.experimental.pallas import tpu as pltpu


def _origin_kernel(x_ref, scale_ref, shift_ref, pool_ref, w_ref, o_ref):
    # x_ref     : (N*C, H*W)   VMEM -- free row-major view of NCHW input
    # scale_ref : (N*C, 1)     VMEM -- folded eval-mode BN scale per row
    # shift_ref : (N*C, 1)     VMEM -- folded eval-mode BN shift per row
    # pool_ref  : (H*W, Hp*Wp) VMEM -- 2x2 sum-pool matrix (4 ones per column)
    # w_ref     : (N*O, N*C)   VMEM -- block-diag 1x1 conv weight * 0.25
    # o_ref     : (N*O, Hp*Wp) VMEM -- free row-major view of NCHW output
    z = jnp.maximum(x_ref[...] * scale_ref[...] + shift_ref[...], 0.0)  # BN+ReLU
    t = jnp.dot(z, pool_ref[...], preferred_element_type=jnp.float32)   # 2x2 sum-pool
    o_ref[...] = jnp.dot(w_ref[...], t,
                         preferred_element_type=jnp.float32).astype(o_ref.dtype)


def _build_pool_matrix(H, W):
    """(H*W, Hp*Wp) matrix whose column (hp, wp) sums the 2x2 window."""
    Hp, Wp = H // 2, W // 2
    P = np.zeros((H * W, Hp * Wp), dtype=np.float32)
    for hp in range(Hp):
        for wp in range(Wp):
            col = hp * Wp + wp
            for dh in (0, 1):
                for dw in (0, 1):
                    P[(2 * hp + dh) * W + (2 * wp + dw), col] = 1.0
    return jnp.asarray(P)


def origin_forward(x_nchw, gamma, beta, run_mean, run_var, conv_w, eps=1e-5):
    """Pallas implementation of origin.forward (eval-mode BatchNorm).

    x_nchw : (N, C, H, W) float32
    conv_w : (O, C, 1, 1) float32  (PyTorch Conv2d weight layout)
    returns: (N, O, H//2, W//2) float32
    """
    N, C, H, W = x_nchw.shape
    O = conv_w.shape[0]
    Hp, Wp = H // 2, W // 2

    # Fold BN (eval mode) into per-channel scale/shift.
    scale_c = (gamma / jnp.sqrt(run_var + eps)).astype(jnp.float32)      # (C,)
    shift_c = (beta - run_mean * scale_c).astype(jnp.float32)            # (C,)
    scale_rows = jnp.tile(scale_c, N).reshape(N * C, 1)
    shift_rows = jnp.tile(shift_c, N).reshape(N * C, 1)

    # Free (layout-preserving) reshape of the contiguous NCHW input.
    x_rows = x_nchw.astype(jnp.float32).reshape(N * C, H * W)

    # 2x2 sum-pool matrix; 0.25 avg factor folded into the conv weight.
    pool_mat = _build_pool_matrix(H, W)                                  # (HW, HpWp)
    w2d = conv_w[:, :, 0, 0].astype(jnp.float32) * 0.25                  # (O, C)
    w_block = jnp.kron(jnp.eye(N, dtype=jnp.float32), w2d)               # (N*O, N*C)

    out_rows = pl.pallas_call(
        _origin_kernel,
        out_shape=jax.ShapeDtypeStruct((N * O, Hp * Wp), jnp.float32),
        in_specs=[
            pl.BlockSpec(memory_space=pltpu.MemorySpace.VMEM),   # x_rows
            pl.BlockSpec(memory_space=pltpu.MemorySpace.VMEM),   # scale_rows
            pl.BlockSpec(memory_space=pltpu.MemorySpace.VMEM),   # shift_rows
            pl.BlockSpec(memory_space=pltpu.MemorySpace.VMEM),   # pool matrix
            pl.BlockSpec(memory_space=pltpu.MemorySpace.VMEM),   # block-diag conv w
        ],
        out_specs=pl.BlockSpec(memory_space=pltpu.MemorySpace.VMEM),
    )(x_rows, scale_rows, shift_rows, pool_mat, w_block)

    # Free reshape back to NCHW.
    return out_rows.reshape(N, O, Hp, Wp)


def _reference(x_nchw, gamma, beta, run_mean, run_var, conv_w, eps=1e-5):
    """Plain-JAX reference mirroring the PyTorch module (eval-mode BN)."""
    g = gamma[None, :, None, None]
    b = beta[None, :, None, None]
    m = run_mean[None, :, None, None]
    v = run_var[None, :, None, None]
    z = jax.nn.relu((x_nchw - m) / jnp.sqrt(v + eps) * g + b)
    c = jax.lax.conv_general_dilated(
        z, conv_w, window_strides=(1, 1), padding="VALID",
        dimension_numbers=("NCHW", "OIHW", "NCHW"))
    p = jax.lax.reduce_window(
        c, 0.0, jax.lax.add, (1, 1, 2, 2), (1, 1, 2, 2), "VALID") * 0.25
    return p


if __name__ == "__main__":
    # Small shapes consistent with the module: batch=2, C_in=4, C_out=8, 16x16.
    N, C, O, H, W = 2, 4, 8, 16, 16

    key = jax.random.PRNGKey(0)
    kx, kg, kb, km, kv, kw = jax.random.split(key, 6)

    x = jax.random.normal(kx, (N, C, H, W), dtype=jnp.float32)
    gamma = 1.0 + 0.1 * jax.random.normal(kg, (C,), dtype=jnp.float32)
    beta = 0.1 * jax.random.normal(kb, (C,), dtype=jnp.float32)
    run_mean = 0.1 * jax.random.normal(km, (C,), dtype=jnp.float32)
    run_var = 1.0 + 0.1 * jnp.abs(jax.random.normal(kv, (C,), dtype=jnp.float32))
    conv_w = 0.1 * jax.random.normal(kw, (O, C, 1, 1), dtype=jnp.float32)

    out = origin_forward(x, gamma, beta, run_mean, run_var, conv_w)
    out = jax.block_until_ready(out)

    ref = _reference(x, gamma, beta, run_mean, run_var, conv_w)
    assert out.shape == (N, O, H // 2, W // 2), out.shape
    np.testing.assert_allclose(np.asarray(out), np.asarray(ref),
                               rtol=1e-5, atol=1e-5)
    # TODO(synk): BatchNorm2d is implemented in eval mode only (running stats);
    # training-mode batch-statistics update has no forward-only equivalent here.
    print("KERNEL_OK")
</pallas_src>

<mosaic_0001>
module attributes {stable_mosaic.version = 11 : i64} {
  func.func @_origin_kernel(%arg0: memref<8x256xf32, #tpu.memory_space<vmem>>, %arg1: memref<8x1xf32, #tpu.memory_space<vmem>>, %arg2: memref<8x1xf32, #tpu.memory_space<vmem>>, %arg3: memref<256x64xf32, #tpu.memory_space<vmem>>, %arg4: memref<16x8xf32, #tpu.memory_space<vmem>>, %arg5: memref<16x64xf32, #tpu.memory_space<vmem>>) attributes {dimension_semantics = [], scalar_prefetch = 0 : i64, scratch_operands = 0 : i64, tpu.core_type = #tpu.core_type<tc>} {
    %c0 = arith.constant 0 : index
    %c0_0 = arith.constant 0 : index
    %0 = vector.load %arg0[%c0, %c0_0] : memref<8x256xf32, #tpu.memory_space<vmem>>, vector<8x256xf32>
    %c0_1 = arith.constant 0 : index
    %c0_2 = arith.constant 0 : index
    %1 = vector.load %arg1[%c0_1, %c0_2] : memref<8x1xf32, #tpu.memory_space<vmem>>, vector<8x1xf32>
    %2 = vector.broadcast %1 : vector<8x1xf32> to vector<8x256xf32>
    %3 = arith.mulf %0, %2 : vector<8x256xf32>
    %c0_3 = arith.constant 0 : index
    %c0_4 = arith.constant 0 : index
    %4 = vector.load %arg2[%c0_3, %c0_4] : memref<8x1xf32, #tpu.memory_space<vmem>>, vector<8x1xf32>
    %5 = vector.broadcast %4 : vector<8x1xf32> to vector<8x256xf32>
    %6 = arith.addf %3, %5 : vector<8x256xf32>
    %cst = arith.constant 0.000000e+00 : f32
    %7 = vector.broadcast %cst : f32 to vector<8x256xf32>
    %8 = arith.maximumf %6, %7 : vector<8x256xf32>
    %c0_5 = arith.constant 0 : index
    %c0_6 = arith.constant 0 : index
    %9 = vector.load %arg3[%c0_5, %c0_6] : memref<256x64xf32, #tpu.memory_space<vmem>>, vector<256x64xf32>
    %cst_7 = arith.constant dense<0.000000e+00> : vector<8x64xf32>
    %10 = tpu.matmul %8, %9, %cst_7 {dimension_numbers = #tpu.dot_dimension_numbers<[1], [0], [0], [1], [0, 0, 1, 1], [], []>} : vector<8x256xf32>, vector<256x64xf32>, vector<8x64xf32> -> vector<8x64xf32>
    %c0_8 = arith.constant 0 : index
    %c0_9 = arith.constant 0 : index
    %11 = vector.load %arg4[%c0_8, %c0_9] : memref<16x8xf32, #tpu.memory_space<vmem>>, vector<16x8xf32>
    %cst_10 = arith.constant dense<0.000000e+00> : vector<16x64xf32>
    %12 = tpu.matmul %11, %10, %cst_10 {dimension_numbers = #tpu.dot_dimension_numbers<[1], [0], [0], [1], [0, 0, 1, 1], [], []>} : vector<16x8xf32>, vector<8x64xf32>, vector<16x64xf32> -> vector<16x64xf32>
    %c0_11 = arith.constant 0 : index
    %c0_12 = arith.constant 0 : index
    %13 = vector.load %arg5[%c0_11, %c0_12] : memref<16x64xf32, #tpu.memory_space<vmem>>, vector<16x64xf32>
    tpu.vector_store %arg5[%c0_11, %c0_12], %12 {strides = array<i32>} : memref<16x64xf32, #tpu.memory_space<vmem>>, vector<16x64xf32>,
    return
  }
}

</mosaic_0001>

<llo_original>
// kernel: tpu_custom_call.1
$region0: #{tpu_custom_call.1}
  #allocation0 [shape = 'u32[]', space=smem, size = 0x4, offset = 0x4, fixed_abs, tag = 'smem constant byte address 0x4 - core index']
  #allocation1 [shape = 'u32[72,128]{1,0:T(1,128)}', space=vmem, size = 0x9000, scoped, tag = 'internal scratch']
  %s0 = inlined_call_operand.vmem [shape: f32[8,256], index: 0, kind: input, shape index: {}]
  %s1 = inlined_call_operand.vmem [shape: f32[8,1], index: 1, kind: input, shape index: {}]
  %s2 = inlined_call_operand.vmem [shape: f32[8,1], index: 2, kind: input, shape index: {}]
  %s3 = inlined_call_operand.vmem [shape: f32[256,64], index: 3, kind: input, shape index: {}]
  %s4 = inlined_call_operand.vmem [shape: f32[16,8], index: 4, kind: input, shape index: {}]
  %s5 = inlined_call_operand.hbm [shape: f32[16,64], index: 5, kind: output, shape index: {}]
  %s6 = sld [smem:[#allocation0]]
  $region30: #{tpu_custom_call.1} parent=0
    _
  %s8 = ssub.s32 1, %s6
  %s9 = scalar_select 0, %s8, %s6
  $region1: #{tpu_custom_call.1} parent=0
    #allocation2 [shape = 'u8[8192]{0}', space=vmem, size = 0x2000, scoped, tag = 'output window, operand 0, single buffered']
    #allocation3 [shape = 's32[1]{0}', space=sflag, size = 0x4, scoped, tag = 'scoped memory for tpu_custom_call.1']
    %10 = vsyncpa [#allocation3], 0
    // Predicated region
    $region2: #{tpu_custom_call.1} parent=1 // pred_check
      _
    $region3: #{tpu_custom_call.1} parent=1 // pred_check_branch
      %12 = sbr.rel (0) target = $region5
    $region4: #{tpu_custom_call.1} parent=1 // pred_region
      _
    $region5: #{tpu_custom_call.1} parent=1 // pred_fallthru
      _
    // Predicated region
    $region6: #{tpu_custom_call.1} parent=1 // pred_check
      _
    $region7: #{tpu_custom_call.1} parent=1 // pred_check_branch
      %14 = sbr.rel (0) target = $region9
    $region8: #{tpu_custom_call.1} parent=1 // pred_region
      _
    $region9: #{tpu_custom_call.1} parent=1 // pred_fallthru
      _
    // Predicated region
    $region10: #{tpu_custom_call.1} parent=1 // pred_check
      _
    $region11: #{tpu_custom_call.1} parent=1 // pred_check_branch
      %16 = sbr.rel (0) target = $region13
    $region12: #{tpu_custom_call.1} parent=1 // pred_region
      _
    $region13: #{tpu_custom_call.1} parent=1 // pred_fallthru
      _
    // Predicated region
    $region14: #{tpu_custom_call.1} parent=1 // pred_check
      _
    $region15: #{tpu_custom_call.1} parent=1 // pred_check_branch
      %18 = sbr.rel (0) target = $region17
    $region16: #{tpu_custom_call.1} parent=1 // pred_region
      _
    $region17: #{tpu_custom_call.1} parent=1 // pred_fallthru
      _
    // Predicated region
    $region18: #{tpu_custom_call.1} parent=1 // pred_check
      _
    $region19: #{tpu_custom_call.1} parent=1 // pred_check_branch
      %20 = sbr.rel (0) target = $region21
    $region20: #{tpu_custom_call.1} parent=1 // pred_region
      _
    $region21: #{tpu_custom_call.1} parent=1 // pred_fallthru
      _
    %v21 = vld [vmem:[%s0] sm:$0xff]
    %v22 = vld [vmem:[%s0 + $0x8] sm:$0xff]
    %v23 = vld [vmem:[%s1] sm:$0xff]
    %25 = vset.pattern.permute.xlu0 0
    %26 = vperm.xlu0 %25, %v23
    %v27 = vpop.permute.xlu0 %26
    %v29 = vmul.f32 %v21, %v27
    %v30 = vmul.f32 %v22, %v27
    %v31 = vld [vmem:[%s2] sm:$0xff]
    %33 = vset.pattern.permute.xlu0 0
    %34 = vperm.xlu0 %33, %v31
    %v35 = vpop.permute.xlu0 %34
    %v37 = vadd.f32 %v29, %v35
    %v38 = vadd.f32 %v30, %v35
    %v39 = vmax.f32 %v37, 0.0
    %v40 = vmax.f32 %v38, 0.0
    %v41 = vld [vmem:[%s3] sm:$0xff]
    %v42 = vld [vmem:[%s3 + $0x8] sm:$0xff]
    %v43 = vld [vmem:[%s3 + $0x10] sm:$0xff]
    %v44 = vld [vmem:[%s3 + $0x18] sm:$0xff]
    %v45 = vld [vmem:[%s3 + $0x20] sm:$0xff]
    %v46 = vld [vmem:[%s3 + $0x28] sm:$0xff]
    %v47 = vld [vmem:[%s3 + $0x30] sm:$0xff]
    %v48 = vld [vmem:[%s3 + $0x38] sm:$0xff]
    %v49 = vld [vmem:[%s3 + $0x40] sm:$0xff]
    %v50 = vld [vmem:[%s3 + $0x48] sm:$0xff]
    %v51 = vld [vmem:[%s3 + $0x50] sm:$0xff]
    %v52 = vld [vmem:[%s3 + $0x58] sm:$0xff]
    %v53 = vld [vmem:[%s3 + $0x60] sm:$0xff]
    %v54 = vld [vmem:[%s3 + $0x68] sm:$0xff]
    %v55 = vld [vmem:[%s3 + $0x70] sm:$0xff]
    %v56 = vld [vmem:[%s3 + $0x78] sm:$0xff]
    %v57 = vld [vmem:[%s3 + $0x80] sm:$0xff]
    %v58 = vld [vmem:[%s3 + $0x88] sm:$0xff]
    %v59 = vld [vmem:[%s3 + $0x90] sm:$0xff]
    %v60 = vld [vmem:[%s3 + $0x98] sm:$0xff]
    %v61 = vld [vmem:[%s3 + $0xa0] sm:$0xff]
    %v62 = vld [vmem:[%s3 + $0xa8] sm:$0xff]
    %v63 = vld [vmem:[%s3 + $0xb0] sm:$0xff]
    %v64 = vld [vmem:[%s3 + $0xb8] sm:$0xff]
    %v65 = vld [vmem:[%s3 + $0xc0] sm:$0xff]
    %v66 = vld [vmem:[%s3 + $0xc8] sm:$0xff]
    %v67 = vld [vmem:[%s3 + $0xd0] sm:$0xff]
    %v68 = vld [vmem:[%s3 + $0xd8] sm:$0xff]
    %v69 = vld [vmem:[%s3 + $0xe0] sm:$0xff]
    %v70 = vld [vmem:[%s3 + $0xe8] sm:$0xff]
    %v71 = vld [vmem:[%s3 + $0xf0] sm:$0xff]
    %v72 = vld [vmem:[%s3 + $0xf8] sm:$0xff]
    %73 = vmatpush.msra.mxu0 %v56
    %74 = vmatpush.msra.mxu0 %v55
    %75 = vmatpush.msra.mxu0 %v54
    %76 = vmatpush.msra.mxu0 %v53
    %77 = vmatpush.msra.mxu0 %v52
    %78 = vmatpush.msra.mxu0 %v51
    %79 = vmatpush.msra.mxu0 %v50
    %80 = vmatpush.msra.mxu0 %v49
    %81 = vmatpush.msra.mxu0 %v48
    %82 = vmatpush.msra.mxu0 %v47
    %83 = vmatpush.msra.mxu0 %v46
    %84 = vmatpush.msra.mxu0 %v45
    %85 = vmatpush.msra.mxu0 %v44
    %86 = vmatpush.msra.mxu0 %v43
    %87 = vmatpush.msra.mxu0 %v42
    %88 = vmatpush.msra.mxu0 %v41
    %89 = vmatmul.f32.gmra.mxu0 %v39
    %v90 = vpop.f32.mrf.mxu0
    %v91 = vadd.f32 0.0, %v90
    %92 = vdwg.mxu0
    %93 = vmatpush.msra.mxu0 %v72
    %94 = vmatpush.msra.mxu0 %v71
    %95 = vmatpush.msra.mxu0 %v70
    %96 = vmatpush.msra.mxu0 %v69
    %97 = vmatpush.msra.mxu0 %v68
    %98 = vmatpush.msra.mxu0 %v67
    %99 = vmatpush.msra.mxu0 %v66
    %100 = vmatpush.msra.mxu0 %v65
    %101 = vmatpush.msra.mxu0 %v64
    %102 = vmatpush.msra.mxu0 %v63
    %103 = vmatpush.msra.mxu0 %v62
    %104 = vmatpush.msra.mxu0 %v61
    %105 = vmatpush.msra.mxu0 %v60
    %106 = vmatpush.msra.mxu0 %v59
    %107 = vmatpush.msra.mxu0 %v58
    %108 = vmatpush.msra.mxu0 %v57
    %109 = vmatmul.f32.gmra.mxu0 %v40
    %v110 = vpop.f32.mrf.mxu0
    %v111 = vadd.f32 %v91, %v110
    %112 = vdwg.mxu0
    %v113 = vld [vmem:[%s4] sm:$0xff]
    %v114 = vld [vmem:[%s4 + $0x8] sm:$0xff]
    %vm115 = vcmask 64512
    %v117 = vsel %vm115, %v113, 0
    %v120 = vsel %vm115, %v114, 0
    %122 = vmatpush.msra.mxu0 0.0
    %123 = vmatpush.msra.mxu0 0.0
    %124 = vmatpush.msra.mxu0 0.0
    %125 = vmatpush.msra.mxu0 0.0
    %126 = vmatpush.msra.mxu0 0.0
    %127 = vmatpush.msra.mxu0 0.0
    %128 = vmatpush.msra.mxu0 0.0
    %129 = vmatpush.msra.mxu0 0.0
    %130 = vmatpush.msra.mxu0 0.0
    %131 = vmatpush.msra.mxu0 0.0
    %132 = vmatpush.msra.mxu0 0.0
    %133 = vmatpush.msra.mxu0 0.0
    %134 = vmatpush.msra.mxu0 0.0
    %135 = vmatpush.msra.mxu0 0.0
    %136 = vmatpush.msra.mxu0 0.0
    %137 = vmatpush.msra.mxu0 %v111
    %138 = vmatmul.f32.gmra.mxu0 %v117
    %v139 = vpop.f32.mrf.mxu0
    %v140 = vadd.f32 0.0, %v139
    %141 = vmatmul.f32.gmra.mxu0 %v120
    %v142 = vpop.f32.mrf.mxu0
    %v143 = vadd.f32 0.0, %v142
    %144 = vdwg.mxu0
    %vm145 = vcmask 523264
    %146 = vst.msk [vmem:[#allocation2] sm:$0xff] %vm145, %v140
    %147 = vst.msk [vmem:[#allocation2 + $0x8] sm:$0xff] %vm145, %v143
    // Predicated region
    $region22: #{tpu_custom_call.1} parent=1 // pred_check
      _
    $region23: #{tpu_custom_call.1} parent=1 // pred_check_branch
      %149 = sbr.rel (0) target = $region25
    $region24: #{tpu_custom_call.1} parent=1 // pred_region
      %151 = vsyncadd [#allocation3], 0
      %s152 = sshll.u32 [#allocation2], 4
      %s153 = int_to_ptr.vmem [resolvable:$true] %s152
      %s154 = sshll.u32 %s5, 4
      %s155 = int_to_ptr.hbm [resolvable:$true] %s154
      %160 = dma.vmem_to_hbm [thread:$0]  %s153, 256, %s155, [#allocation3], 128, 128, 8
    $region25: #{tpu_custom_call.1} parent=1 // pred_fallthru
      _
    // Predicated region
    $region26: #{tpu_custom_call.1} parent=1 // pred_check
      _
    $region27: #{tpu_custom_call.1} parent=1 // pred_check_branch
      %162 = sbr.rel (0) target = $region29
    $region28: #{tpu_custom_call.1} parent=1 // pred_region
      %164 = dma.done [#allocation3], 256
    $region29: #{tpu_custom_call.1} parent=1 // pred_fallthru
      _
    %165 = vsyncpa [#allocation3], 1

</llo_original>
